<compile_context>
chip_gen: v7x
topology: tpu7x:2x2x1
jax: 0.10.0
libtpu: 0.0.40
codegen_flags: <defaults>
</compile_context>

<pallas_src>
import jax
import jax.numpy as jnp
from jax.experimental import pallas as pl
from jax.experimental.pallas import tpu as pltpu

LANES = 128
SUBLANES = 8
# f32 elements per input per pipeline buffer (2 MiB) -> 2 inputs x 2 buffers
# x 2 MiB = 8 MiB, inside even v5e's 16 MiB scoped-VMEM default.
_DEFAULT_BLOCK_ELEMS = 512 * 1024


def _default_num_parts():
    """2 parts only on dual-TensorCore v7x; 1 elsewhere (per perf review)."""
    try:
        kind = jax.devices()[0].device_kind.lower()
        if "v7" in kind:
            return 2
    except Exception:
        pass
    return 1


def _make_kernel(tile_r, tile_t, rows, cols, row_steps):
    """tile_r / tile_t / rows / cols / row_steps are static Python ints."""

    def kernel(x_ref, t_ref, acc_ref):
        p = pl.program_id(0)   # part (dual-TC on v7x)
        i = pl.program_id(1)   # row-tile step within the part
        j = pl.program_id(2)   # column-tile step

        @pl.when(jnp.logical_and(i == 0, j == 0))
        def _():
            acc_ref[...] = jnp.zeros_like(acc_ref)

        x = x_ref[...].astype(jnp.float32)
        t = t_ref[...]                                   # native dtype, no f32 cast
        beat = t == jnp.asarray(1, dtype=t.dtype)
        nobeat = t == jnp.asarray(0, dtype=t.dtype)

        def accumulate(beat_m, nobeat_m):
            # target is exactly 1 (resp. 0) wherever these masks are set, so
            # (x-1)^2 / x^2 replace the generic (x-t)^2: saves the t cast and
            # the subtraction on the VALU critical path.
            d = x - 1.0
            beat_sq = jnp.where(beat_m, d * d, 0.0)
            nobeat_sq = jnp.where(nobeat_m, x * x, 0.0)

            def fold(v):  # (tile_r, tile_t) -> (1, 1, tile_t) partial sum
                return jnp.sum(v, axis=0, keepdims=True)[None]

            acc_ref[0:1, 0:1, :] += fold(beat_sq)
            acc_ref[0:1, 1:2, :] += fold(beat_m.astype(jnp.float32))
            acc_ref[0:1, 2:3, :] += fold(nobeat_sq)
            acc_ref[0:1, 3:4, :] += fold(nobeat_m.astype(jnp.float32))

        # Runtime per-tile raggedness predicate (scalar): the iota/compare/AND
        # masking work only runs for boundary or clamped-duplicate tiles.
        row0 = (p * row_steps + i) * tile_r
        col0 = j * tile_t
        ragged = jnp.logical_or(row0 + tile_r > rows, col0 + tile_t > cols)

        @pl.when(jnp.logical_not(ragged))
        def _():
            accumulate(beat, nobeat)

        @pl.when(ragged)
        def _():
            rid = jax.lax.broadcasted_iota(jnp.int32, (tile_r, tile_t), 0)
            cid = jax.lax.broadcasted_iota(jnp.int32, (tile_r, tile_t), 1)
            valid = jnp.logical_and(rid < rows - row0, cid < cols - col0)
            # where()-based masking (not mask*sq) so Inf/NaN garbage in OOB
            # rows / lanes cannot leak into the sums.
            accumulate(jnp.logical_and(beat, valid),
                       jnp.logical_and(nobeat, valid))

    return kernel


def global_mse_loss(inputs, target, *, block_elems=_DEFAULT_BLOCK_ELEMS,
                    num_parts=None):
    """Pallas implementation of GlobalMSELoss.forward. Returns 3 f32 scalars."""
    assert inputs.shape == target.shape
    n = int(inputs.size)

    # ---- zero-copy 2-D views (no pad, no prefix slice) ----------------------
    if n % LANES == 0:
        rows, cols = n // LANES, LANES                    # dense, lane-optimal
    else:
        cols = int(inputs.shape[-1]) if inputs.ndim > 0 else 1
        rows = n // cols                                  # native trailing dim
    x2 = inputs.reshape(rows, cols)
    t2 = target.reshape(rows, cols)

    # ---- tile sizing ---------------------------------------------------------
    block_elems = max(int(block_elems), SUBLANES * LANES)
    if cols * SUBLANES <= block_elems:
        tile_t = cols                                     # full last dim (always legal)
    else:
        tile_t = max(LANES, (block_elems // SUBLANES) // LANES * LANES)
    phys_t = ((tile_t + LANES - 1) // LANES) * LANES
    rows_fit = max(SUBLANES, (block_elems // phys_t) // SUBLANES * SUBLANES)
    tile_r = rows if rows <= rows_fit else rows_fit       # full dim or 8-multiple

    col_steps = pl.cdiv(cols, tile_t)
    num_row_tiles = pl.cdiv(rows, tile_r)
    parts = _default_num_parts() if num_parts is None else int(num_parts)
    parts = max(1, min(parts, num_row_tiles))
    row_steps = pl.cdiv(num_row_tiles, parts)

    if parts * row_steps == num_row_tiles:
        def data_map(p, i, j):
            return (p * row_steps + i, j)
    else:
        last_tile = num_row_tiles - 1

        def data_map(p, i, j):
            # Clamp fully-OOB tile indices; the in-kernel mask zeroes their
            # contribution.  Only reachable when parts > 1 doesn't divide.
            return (jnp.minimum(p * row_steps + i, last_tile), j)

    data_spec = pl.BlockSpec((tile_r, tile_t), data_map)
    out_shape = jax.ShapeDtypeStruct((parts, 4, tile_t), jnp.float32)
    out_spec = pl.BlockSpec((1, 4, tile_t), lambda p, i, j: (p, 0, 0))

    in_bytes = n * (jnp.dtype(inputs.dtype).itemsize
                    + jnp.dtype(target.dtype).itemsize)
    cost = pl.CostEstimate(flops=8 * n, transcendentals=0,
                           bytes_accessed=int(in_bytes + parts * 4 * tile_t * 4))

    acc = pl.pallas_call(
        _make_kernel(tile_r, tile_t, rows, cols, row_steps),
        out_shape=out_shape,
        grid_spec=pltpu.PrefetchScalarGridSpec(
            num_scalar_prefetch=0,
            grid=(parts, row_steps, col_steps),
            in_specs=[data_spec, data_spec],
            out_specs=out_spec),
        compiler_params=pltpu.CompilerParams(
            # Default tiles keep the pipeline within every generation's scoped
            # VMEM default; bigger sweeps (e.g. 8192 rows on v7x) would also
            # need vmem_limit_bytes here.
            dimension_semantics=("parallel", "arbitrary", "arbitrary")),
        cost_estimate=cost,
    )(x2, t2)

    # Tiny final cross-lane/part reduction + the two divisions, once, in the
    # wrapper on the (parts, 4, tile_t) partials.
    sums = jnp.sum(acc, axis=(0, 2))
    beat_loss = sums[0] / sums[1]
    no_beat_loss = sums[2] / sums[3]
    return no_beat_loss + beat_loss, beat_loss, no_beat_loss


def _reference(inputs, target):
    x = inputs.reshape(-1).astype(jnp.float32)
    t = target.reshape(-1).astype(jnp.float32)
    beat = t == 1.0
    nobeat = t == 0.0
    sq = (x - t) ** 2
    beat_loss = jnp.sum(jnp.where(beat, sq, 0.0)) / jnp.sum(beat)
    no_beat_loss = jnp.sum(jnp.where(nobeat, sq, 0.0)) / jnp.sum(nobeat)
    return no_beat_loss + beat_loss, beat_loss, no_beat_loss


if __name__ == "__main__":
    key = jax.random.PRNGKey(0)

    # wavebeat-style shapes: [batch, classes (beat/downbeat), time]
    cases = [
        ((2, 2, 2048), jnp.float32, {}),                      # 128-aligned, single tile
        ((2, 2, 3000), jnp.float32, {}),                      # unaligned: native layout, no pad, no mask
        ((2, 2, 3000), jnp.float32, dict(block_elems=4096)),  # forced column tiling + ragged lane mask
        ((2, 2, 2432), jnp.float32, dict(block_elems=4096, num_parts=2)),  # row tiles, ragged rows, 2 parts
        ((2, 2, 1024), jnp.bfloat16, {}),                     # native-dtype (bf16) streaming
    ]
    for shape, dt, kwargs in cases:
        key, k_in, k_tg = jax.random.split(key, 3)
        inputs = jax.random.uniform(k_in, shape, dtype=jnp.float32).astype(dt)
        target = (jax.random.uniform(k_tg, shape) < 0.1).astype(jnp.float32)

        fn = jax.jit(lambda a, b, kw=kwargs: global_mse_loss(a, b, **kw))
        total, beat_loss, no_beat_loss = jax.block_until_ready(fn(inputs, target))

        ref_total, ref_beat, ref_nobeat = _reference(inputs, target)
        assert jnp.allclose(beat_loss, ref_beat, rtol=1e-4, atol=1e-5), (shape, kwargs)
        assert jnp.allclose(no_beat_loss, ref_nobeat, rtol=1e-4, atol=1e-5), (shape, kwargs)
        assert jnp.allclose(total, ref_total, rtol=1e-4, atol=1e-5), (shape, kwargs)

    print("KERNEL_OK")
</pallas_src>

<mosaic_0001>
module attributes {stable_mosaic.version = 11 : i64} {
  func.func @kernel(%arg0: i32, %arg1: i32, %arg2: i32, %arg3: memref<64x128xf32, #tpu.memory_space<vmem>>, %arg4: memref<64x128xf32, #tpu.memory_space<vmem>>, %arg5: memref<1x4x128xf32, #tpu.memory_space<vmem>>) attributes {dimension_semantics = [#tpu.dimension_semantics<parallel>, #tpu.dimension_semantics<arbitrary>, #tpu.dimension_semantics<arbitrary>], iteration_bounds = array<i64: 1, 1, 1>, scalar_prefetch = 0 : i64, scratch_operands = 0 : i64, tpu.core_type = #tpu.core_type<tc>, window_params = [{transform_indices = @transform_0, window_bounds = array<i64: 64, 128>}, {transform_indices = @transform_1, window_bounds = array<i64: 64, 128>}, {transform_indices = @transform_2, window_bounds = array<i64: 1, 4, 128>}]} {
    %c0_i32 = arith.constant 0 : i32
    %0 = arith.cmpi eq, %arg1, %c0_i32 : i32
    %c0_i32_0 = arith.constant 0 : i32
    %1 = arith.cmpi eq, %arg2, %c0_i32_0 : i32
    %2 = arith.andi %0, %1 : i1
    %3 = arith.extui %2 : i1 to i32
    %c0_i32_1 = arith.constant 0 : i32
    %4 = arith.cmpi ne, %3, %c0_i32_1 : i32
    scf.if %4 {
      %cst_12 = arith.constant 0.000000e+00 : f32
      %25 = vector.broadcast %cst_12 : f32 to vector<1x4x128xf32>
      %c0_13 = arith.constant 0 : index
      %c0_14 = arith.constant 0 : index
      %c0_15 = arith.constant 0 : index
      %26 = vector.load %arg5[%c0_13, %c0_14, %c0_15] : memref<1x4x128xf32, #tpu.memory_space<vmem>>, vector<1x4x128xf32>
      tpu.vector_store %arg5[%c0_13, %c0_14, %c0_15], %25 {strides = array<i32>} : memref<1x4x128xf32, #tpu.memory_space<vmem>>, vector<1x4x128xf32>,
    } else {
    }
    %c0 = arith.constant 0 : index
    %c0_2 = arith.constant 0 : index
    %5 = vector.load %arg3[%c0, %c0_2] : memref<64x128xf32, #tpu.memory_space<vmem>>, vector<64x128xf32>
    %c0_3 = arith.constant 0 : index
    %c0_4 = arith.constant 0 : index
    %6 = vector.load %arg4[%c0_3, %c0_4] : memref<64x128xf32, #tpu.memory_space<vmem>>, vector<64x128xf32>
    %cst = arith.constant 1.000000e+00 : f32
    %7 = vector.broadcast %cst : f32 to vector<64x128xf32>
    %8 = arith.cmpf oeq, %6, %7 : vector<64x128xf32>
    %cst_5 = arith.constant 0.000000e+00 : f32
    %9 = vector.broadcast %cst_5 : f32 to vector<64x128xf32>
    %10 = arith.cmpf oeq, %6, %9 : vector<64x128xf32>
    %c1_i32 = arith.constant 1 : i32
    %11 = arith.muli %arg0, %c1_i32 : i32
    %12 = arith.addi %11, %arg1 : i32
    %c64_i32 = arith.constant 64 : i32
    %13 = arith.muli %12, %c64_i32 : i32
    %c128_i32 = arith.constant 128 : i32
    %14 = arith.muli %arg2, %c128_i32 : i32
    %c64_i32_6 = arith.constant 64 : i32
    %15 = arith.addi %13, %c64_i32_6 : i32
    %c64_i32_7 = arith.constant 64 : i32
    %16 = arith.cmpi sgt, %15, %c64_i32_7 : i32
    %c128_i32_8 = arith.constant 128 : i32
    %17 = arith.addi %14, %c128_i32_8 : i32
    %c128_i32_9 = arith.constant 128 : i32
    %18 = arith.cmpi sgt, %17, %c128_i32_9 : i32
    %19 = arith.ori %16, %18 : i1
    %true = arith.constant true
    %20 = arith.xori %19, %true : i1
    %21 = arith.extui %20 : i1 to i32
    %c0_i32_10 = arith.constant 0 : i32
    %22 = arith.cmpi ne, %21, %c0_i32_10 : i32
    scf.if %22 {
      %cst_12 = arith.constant 1.000000e+00 : f32
      %25 = vector.broadcast %cst_12 : f32 to vector<64x128xf32>
      %26 = arith.subf %5, %25 : vector<64x128xf32>
      %27 = arith.mulf %26, %26 : vector<64x128xf32>
      %cst_13 = arith.constant 0.000000e+00 : f32
      %28 = vector.broadcast %cst_13 : f32 to vector<64x128xf32>
      %29 = arith.select %8, %27, %28 : vector<64x128xi1>, vector<64x128xf32>
      %30 = arith.mulf %5, %5 : vector<64x128xf32>
      %cst_14 = arith.constant 0.000000e+00 : f32
      %31 = vector.broadcast %cst_14 : f32 to vector<64x128xf32>
      %32 = arith.select %10, %30, %31 : vector<64x128xi1>, vector<64x128xf32>
      %c0_15 = arith.constant 0 : index
      %c0_16 = arith.constant 0 : index
      %c0_17 = arith.constant 0 : index
      %33 = vector.load %arg5[%c0_15, %c0_16, %c0_17] : memref<1x4x128xf32, #tpu.memory_space<vmem>>, vector<1x1x128xf32>
      %cst_18 = arith.constant dense<0.000000e+00> : vector<128xf32>
      %34 = vector.multi_reduction <add>, %29, %cst_18 [0] : vector<64x128xf32> to vector<128xf32>
      %35 = vector.shape_cast %34 : vector<128xf32> to vector<1x128xf32>
      %36 = vector.shape_cast %35 : vector<1x128xf32> to vector<1x1x128xf32>
      %37 = arith.addf %33, %36 : vector<1x1x128xf32>
      %c0_19 = arith.constant 0 : index
      %c0_20 = arith.constant 0 : index
      %c0_21 = arith.constant 0 : index
      %38 = vector.load %arg5[%c0_19, %c0_20, %c0_21] : memref<1x4x128xf32, #tpu.memory_space<vmem>>, vector<1x1x128xf32>
      tpu.vector_store %arg5[%c0_19, %c0_20, %c0_21], %37 {strides = array<i32>} : memref<1x4x128xf32, #tpu.memory_space<vmem>>, vector<1x1x128xf32>,
      %c0_22 = arith.constant 0 : index
      %c1 = arith.constant 1 : index
      %c0_23 = arith.constant 0 : index
      %39 = vector.load %arg5[%c0_22, %c1, %c0_23] : memref<1x4x128xf32, #tpu.memory_space<vmem>>, vector<1x1x128xf32>
      %40 = arith.extui %8 : vector<64x128xi1> to vector<64x128xi32>
      %41 = arith.sitofp %40 : vector<64x128xi32> to vector<64x128xf32>
      %cst_24 = arith.constant dense<0.000000e+00> : vector<128xf32>
      %42 = vector.multi_reduction <add>, %41, %cst_24 [0] : vector<64x128xf32> to vector<128xf32>
      %43 = vector.shape_cast %42 : vector<128xf32> to vector<1x128xf32>
      %44 = vector.shape_cast %43 : vector<1x128xf32> to vector<1x1x128xf32>
      %45 = arith.addf %39, %44 : vector<1x1x128xf32>
      %c0_25 = arith.constant 0 : index
      %c1_26 = arith.constant 1 : index
      %c0_27 = arith.constant 0 : index
      %46 = vector.load %arg5[%c0_25, %c1_26, %c0_27] : memref<1x4x128xf32, #tpu.memory_space<vmem>>, vector<1x1x128xf32>
      tpu.vector_store %arg5[%c0_25, %c1_26, %c0_27], %45 {strides = array<i32>} : memref<1x4x128xf32, #tpu.memory_space<vmem>>, vector<1x1x128xf32>,
      %c0_28 = arith.constant 0 : index
      %c2 = arith.constant 2 : index
      %c0_29 = arith.constant 0 : index
      %47 = vector.load %arg5[%c0_28, %c2, %c0_29] : memref<1x4x128xf32, #tpu.memory_space<vmem>>, vector<1x1x128xf32>
      %cst_30 = arith.constant dense<0.000000e+00> : vector<128xf32>
      %48 = vector.multi_reduction <add>, %32, %cst_30 [0] : vector<64x128xf32> to vector<128xf32>
      %49 = vector.shape_cast %48 : vector<128xf32> to vector<1x128xf32>
      %50 = vector.shape_cast %49 : vector<1x128xf32> to vector<1x1x128xf32>
      %51 = arith.addf %47, %50 : vector<1x1x128xf32>
      %c0_31 = arith.constant 0 : index
      %c2_32 = arith.constant 2 : index
      %c0_33 = arith.constant 0 : index
      %52 = vector.load %arg5[%c0_31, %c2_32, %c0_33] : memref<1x4x128xf32, #tpu.memory_space<vmem>>, vector<1x1x128xf32>
      tpu.vector_store %arg5[%c0_31, %c2_32, %c0_33], %51 {strides = array<i32>} : memref<1x4x128xf32, #tpu.memory_space<vmem>>, vector<1x1x128xf32>,
      %c0_34 = arith.constant 0 : index
      %c3 = arith.constant 3 : index
      %c0_35 = arith.constant 0 : index
      %53 = vector.load %arg5[%c0_34, %c3, %c0_35] : memref<1x4x128xf32, #tpu.memory_space<vmem>>, vector<1x1x128xf32>
      %54 = arith.extui %10 : vector<64x128xi1> to vector<64x128xi32>
      %55 = arith.sitofp %54 : vector<64x128xi32> to vector<64x128xf32>
      %cst_36 = arith.constant dense<0.000000e+00> : vector<128xf32>
      %56 = vector.multi_reduction <add>, %55, %cst_36 [0] : vector<64x128xf32> to vector<128xf32>
      %57 = vector.shape_cast %56 : vector<128xf32> to vector<1x128xf32>
      %58 = vector.shape_cast %57 : vector<1x128xf32> to vector<1x1x128xf32>
      %59 = arith.addf %53, %58 : vector<1x1x128xf32>
      %c0_37 = arith.constant 0 : index
      %c3_38 = arith.constant 3 : index
      %c0_39 = arith.constant 0 : index
      %60 = vector.load %arg5[%c0_37, %c3_38, %c0_39] : memref<1x4x128xf32, #tpu.memory_space<vmem>>, vector<1x1x128xf32>
      tpu.vector_store %arg5[%c0_37, %c3_38, %c0_39], %59 {strides = array<i32>} : memref<1x4x128xf32, #tpu.memory_space<vmem>>, vector<1x1x128xf32>,
    } else {
    }
    %23 = arith.extui %19 : i1 to i32
    %c0_i32_11 = arith.constant 0 : i32
    %24 = arith.cmpi ne, %23, %c0_i32_11 : i32
    scf.if %24 {
      %25 = tpu.iota {dimensions = array<i32: 0>} : vector<64x128xi32>
      %26 = tpu.iota {dimensions = array<i32: 1>} : vector<64x128xi32>
      %c64_i32_12 = arith.constant 64 : i32
      %27 = arith.subi %c64_i32_12, %13 : i32
      %28 = vector.broadcast %27 : i32 to vector<64x128xi32>
      %29 = arith.cmpi slt, %25, %28 : vector<64x128xi32>
      %c128_i32_13 = arith.constant 128 : i32
      %30 = arith.subi %c128_i32_13, %14 : i32
      %31 = vector.broadcast %30 : i32 to vector<64x128xi32>
      %32 = arith.cmpi slt, %26, %31 : vector<64x128xi32>
      %33 = arith.andi %29, %32 : vector<64x128xi1>
      %34 = arith.andi %8, %33 : vector<64x128xi1>
      %35 = arith.andi %10, %33 : vector<64x128xi1>
      %cst_14 = arith.constant 1.000000e+00 : f32
      %36 = vector.broadcast %cst_14 : f32 to vector<64x128xf32>
      %37 = arith.subf %5, %36 : vector<64x128xf32>
      %38 = arith.mulf %37, %37 : vector<64x128xf32>
      %cst_15 = arith.constant 0.000000e+00 : f32
      %39 = vector.broadcast %cst_15 : f32 to vector<64x128xf32>
      %40 = arith.select %34, %38, %39 : vector<64x128xi1>, vector<64x128xf32>
      %41 = arith.mulf %5, %5 : vector<64x128xf32>
      %cst_16 = arith.constant 0.000000e+00 : f32
      %42 = vector.broadcast %cst_16 : f32 to vector<64x128xf32>
      %43 = arith.select %35, %41, %42 : vector<64x128xi1>, vector<64x128xf32>
      %c0_17 = arith.constant 0 : index
      %c0_18 = arith.constant 0 : index
      %c0_19 = arith.constant 0 : index
      %44 = vector.load %arg5[%c0_17, %c0_18, %c0_19] : memref<1x4x128xf32, #tpu.memory_space<vmem>>, vector<1x1x128xf32>
      %cst_20 = arith.constant dense<0.000000e+00> : vector<128xf32>
      %45 = vector.multi_reduction <add>, %40, %cst_20 [0] : vector<64x128xf32> to vector<128xf32>
      %46 = vector.shape_cast %45 : vector<128xf32> to vector<1x128xf32>
      %47 = vector.shape_cast %46 : vector<1x128xf32> to vector<1x1x128xf32>
      %48 = arith.addf %44, %47 : vector<1x1x128xf32>
      %c0_21 = arith.constant 0 : index
      %c0_22 = arith.constant 0 : index
      %c0_23 = arith.constant 0 : index
      %49 = vector.load %arg5[%c0_21, %c0_22, %c0_23] : memref<1x4x128xf32, #tpu.memory_space<vmem>>, vector<1x1x128xf32>
      tpu.vector_store %arg5[%c0_21, %c0_22, %c0_23], %48 {strides = array<i32>} : memref<1x4x128xf32, #tpu.memory_space<vmem>>, vector<1x1x128xf32>,
      %c0_24 = arith.constant 0 : index
      %c1 = arith.constant 1 : index
      %c0_25 = arith.constant 0 : index
      %50 = vector.load %arg5[%c0_24, %c1, %c0_25] : memref<1x4x128xf32, #tpu.memory_space<vmem>>, vector<1x1x128xf32>
      %51 = arith.extui %34 : vector<64x128xi1> to vector<64x128xi32>
      %52 = arith.sitofp %51 : vector<64x128xi32> to vector<64x128xf32>
      %cst_26 = arith.constant dense<0.000000e+00> : vector<128xf32>
      %53 = vector.multi_reduction <add>, %52, %cst_26 [0] : vector<64x128xf32> to vector<128xf32>
      %54 = vector.shape_cast %53 : vector<128xf32> to vector<1x128xf32>
      %55 = vector.shape_cast %54 : vector<1x128xf32> to vector<1x1x128xf32>
      %56 = arith.addf %50, %55 : vector<1x1x128xf32>
      %c0_27 = arith.constant 0 : index
      %c1_28 = arith.constant 1 : index
      %c0_29 = arith.constant 0 : index
      %57 = vector.load %arg5[%c0_27, %c1_28, %c0_29] : memref<1x4x128xf32, #tpu.memory_space<vmem>>, vector<1x1x128xf32>
      tpu.vector_store %arg5[%c0_27, %c1_28, %c0_29], %56 {strides = array<i32>} : memref<1x4x128xf32, #tpu.memory_space<vmem>>, vector<1x1x128xf32>,
      %c0_30 = arith.constant 0 : index
      %c2 = arith.constant 2 : index
      %c0_31 = arith.constant 0 : index
      %58 = vector.load %arg5[%c0_30, %c2, %c0_31] : memref<1x4x128xf32, #tpu.memory_space<vmem>>, vector<1x1x128xf32>
      %cst_32 = arith.constant dense<0.000000e+00> : vector<128xf32>
      %59 = vector.multi_reduction <add>, %43, %cst_32 [0] : vector<64x128xf32> to vector<128xf32>
      %60 = vector.shape_cast %59 : vector<128xf32> to vector<1x128xf32>
      %61 = vector.shape_cast %60 : vector<1x128xf32> to vector<1x1x128xf32>
      %62 = arith.addf %58, %61 : vector<1x1x128xf32>
      %c0_33 = arith.constant 0 : index
      %c2_34 = arith.constant 2 : index
      %c0_35 = arith.constant 0 : index
      %63 = vector.load %arg5[%c0_33, %c2_34, %c0_35] : memref<1x4x128xf32, #tpu.memory_space<vmem>>, vector<1x1x128xf32>
      tpu.vector_store %arg5[%c0_33, %c2_34, %c0_35], %62 {strides = array<i32>} : memref<1x4x128xf32, #tpu.memory_space<vmem>>, vector<1x1x128xf32>,
      %c0_36 = arith.constant 0 : index
      %c3 = arith.constant 3 : index
      %c0_37 = arith.constant 0 : index
      %64 = vector.load %arg5[%c0_36, %c3, %c0_37] : memref<1x4x128xf32, #tpu.memory_space<vmem>>, vector<1x1x128xf32>
      %65 = arith.extui %35 : vector<64x128xi1> to vector<64x128xi32>
      %66 = arith.sitofp %65 : vector<64x128xi32> to vector<64x128xf32>
      %cst_38 = arith.constant dense<0.000000e+00> : vector<128xf32>
      %67 = vector.multi_reduction <add>, %66, %cst_38 [0] : vector<64x128xf32> to vector<128xf32>
      %68 = vector.shape_cast %67 : vector<128xf32> to vector<1x128xf32>
      %69 = vector.shape_cast %68 : vector<1x128xf32> to vector<1x1x128xf32>
      %70 = arith.addf %64, %69 : vector<1x1x128xf32>
      %c0_39 = arith.constant 0 : index
      %c3_40 = arith.constant 3 : index
      %c0_41 = arith.constant 0 : index
      %71 = vector.load %arg5[%c0_39, %c3_40, %c0_41] : memref<1x4x128xf32, #tpu.memory_space<vmem>>, vector<1x1x128xf32>
      tpu.vector_store %arg5[%c0_39, %c3_40, %c0_41], %70 {strides = array<i32>} : memref<1x4x128xf32, #tpu.memory_space<vmem>>, vector<1x1x128xf32>,
    } else {
    }
    return
  }
  func.func @transform_0(%arg0: i32, %arg1: i32, %arg2: i32) -> (i32, i32) {
    %c1_i32 = arith.constant 1 : i32
    %0 = arith.muli %arg0, %c1_i32 : i32
    %1 = arith.addi %0, %arg1 : i32
    %c0_i32 = arith.constant 0 : i32
    return %1, %arg2 : i32, i32
  }
  func.func @transform_1(%arg0: i32, %arg1: i32, %arg2: i32) -> (i32, i32) {
    %c1_i32 = arith.constant 1 : i32
    %0 = arith.muli %arg0, %c1_i32 : i32
    %1 = arith.addi %0, %arg1 : i32
    %c0_i32 = arith.constant 0 : i32
    return %1, %arg2 : i32, i32
  }
  func.func @transform_2(%arg0: i32, %arg1: i32, %arg2: i32) -> (i32, i32, i32) {
    %c0_i32 = arith.constant 0 : i32
    %c0_i32_0 = arith.constant 0 : i32
    %c0_i32_1 = arith.constant 0 : i32
    return %arg0, %c0_i32, %c0_i32_0 : i32, i32, i32
  }
}

</mosaic_0001>

<llo_original>
// kernel: _lambda_.1
$region0: #{_lambda_.1}
  #allocation0 [shape = 'u32[]', space=smem, size = 0x4, offset = 0x4, fixed_abs, tag = 'smem constant byte address 0x4 - core index']
  #allocation1 [shape = 'u32[144,128]{1,0:T(1,128)}', space=vmem, size = 0x12000, scoped, tag = 'internal scratch']
  %s0 = inlined_call_operand.vmem [shape: f32[64,128], index: 0, kind: input, shape index: {}]
  %s1 = inlined_call_operand.vmem [shape: f32[64,128], index: 1, kind: input, shape index: {}]
  %s2 = inlined_call_operand.vmem [shape: f32[1,4,128], index: 2, kind: output, shape index: {}]
  %s3 = sld [smem:[#allocation0]]
  $region30: #{_lambda_.1} parent=0
    _
  %s5 = ssub.s32 1, %s3
  %s6 = scalar_select 0, %s5, %s3
  // Predicated region
  $region2: #{_lambda_.1} parent=0 // pred_check
    _
  $region3: #{_lambda_.1} parent=0 // pred_check_branch
    %8 = sbr.rel (0) target = $region5
  $region4: #{_lambda_.1} parent=0 // pred_region
    %s9 = sadd.s32 0, 0
    %s10 = smul.u32 8, %s9
    %p11 = scmp.lt.s32.totalorder %s10, 7
    %s12 = scalar_select %p11, %s10, 7
    %s13 = smul.addr %s12, 8
    %s14 = scalar_lea.vmem %s0, %s13
    %s15 = sadd.s32 0, 0
    %s16 = smul.u32 8, %s15
  $region5: #{_lambda_.1} parent=0 // pred_fallthru
    _
  // Predicated region
  $region6: #{_lambda_.1} parent=0 // pred_check
    _
  $region7: #{_lambda_.1} parent=0 // pred_check_branch
    %18 = sbr.rel (0) target = $region9
  $region8: #{_lambda_.1} parent=0 // pred_region
    %s19 = sadd.s32 0, 0
    %s20 = smul.u32 8, %s19
    %p21 = scmp.lt.s32.totalorder %s20, 7
    %s22 = scalar_select %p21, %s20, 7
    %s23 = smul.addr %s22, 8
    %s24 = scalar_lea.vmem %s1, %s23
    %s25 = sadd.s32 0, 0
    %s26 = smul.u32 8, %s25
  $region9: #{_lambda_.1} parent=0 // pred_fallthru
    _
  %s27 = sadd.s32 0, 0
  %s28 = smul.u32 8, %s27
  %p29 = scmp.lt.s32.totalorder %s28, 7
  %s30 = scalar_select %p29, %s28, 7
  %s31 = smul.addr %s30, 8
  %s32 = scalar_lea.vmem %s0, %s31
  %s33 = sadd.s32 0, 0
  %s34 = smul.u32 8, %s33
  %p35 = scmp.lt.s32.totalorder %s34, 7
  %s36 = scalar_select %p35, %s34, 7
  %s37 = smul.addr %s36, 8
  %s38 = scalar_lea.vmem %s1, %s37
  %s39 = sadd.s32 0, 0
  %s40 = smul.u32 8, %s39
  %p41 = scmp.lt.s32.totalorder %s40, 7
  %s42 = scalar_select %p41, %s40, 7
  %s43 = smul.addr %s42, 8
  %s44 = scalar_lea.vmem %s0, %s43
  %s45 = sadd.s32 0, 0
  %s46 = smul.u32 8, %s45
  %s47 = sadd.s32 0, 0
  %s48 = smul.u32 8, %s47
  %p49 = scmp.lt.s32.totalorder %s48, 7
  %s50 = scalar_select %p49, %s48, 7
  %s51 = smul.addr %s50, 8
  %s52 = scalar_lea.vmem %s1, %s51
  %s53 = sadd.s32 0, 0
  %s54 = smul.u32 8, %s53
  %p55 = scmp.eq.s32.totalorder 0, 0
  %p56 = scmp.eq.s32.totalorder 0, 0
  %p57 = pnand %p55, %p56
  %p58 = pneg %p57
  // Predicated region
  $region10: #{_lambda_.1} parent=0 // pred_check
    _
  $region11: #{_lambda_.1} parent=0 // pred_check_branch
    %60 = sbr.rel (%p57) target = $region13
  $region12: #{_lambda_.1} parent=0 // pred_region
    %61 = vst [vmem:[%s2] sm:$0xf] 0.0
  $region13: #{_lambda_.1} parent=0 // pred_fallthru
    _
  %v62 = vld [vmem:[%s44] sm:$0xff]
  %v63 = vld [vmem:[%s44 + $0x8] sm:$0xff]
  %v64 = vld [vmem:[%s44 + $0x10] sm:$0xff]
  %v65 = vld [vmem:[%s44 + $0x18] sm:$0xff]
  %v66 = vld [vmem:[%s44 + $0x20] sm:$0xff]
  %v67 = vld [vmem:[%s44 + $0x28] sm:$0xff]
  %v68 = vld [vmem:[%s44 + $0x30] sm:$0xff]
  %v69 = vld [vmem:[%s44 + $0x38] sm:$0xff]
  %v70 = vld [vmem:[%s52] sm:$0xff]
  %v71 = vld [vmem:[%s52 + $0x8] sm:$0xff]
  %v72 = vld [vmem:[%s52 + $0x10] sm:$0xff]
  %v73 = vld [vmem:[%s52 + $0x18] sm:$0xff]
  %v74 = vld [vmem:[%s52 + $0x20] sm:$0xff]
  %v75 = vld [vmem:[%s52 + $0x28] sm:$0xff]
  %v76 = vld [vmem:[%s52 + $0x30] sm:$0xff]
  %v77 = vld [vmem:[%s52 + $0x38] sm:$0xff]
  %vm78 = vcmp.eq.f32.partialorder %v70, 1.0
  %vm79 = vcmp.eq.f32.partialorder %v71, 1.0
  %vm80 = vcmp.eq.f32.partialorder %v72, 1.0
  %vm81 = vcmp.eq.f32.partialorder %v73, 1.0
  %vm82 = vcmp.eq.f32.partialorder %v74, 1.0
  %vm83 = vcmp.eq.f32.partialorder %v75, 1.0
  %vm84 = vcmp.eq.f32.partialorder %v76, 1.0
  %vm85 = vcmp.eq.f32.partialorder %v77, 1.0
  %vm86 = vcmp.eq.f32.partialorder %v70, 0.0
  %vm87 = vcmp.eq.f32.partialorder %v71, 0.0
  %vm88 = vcmp.eq.f32.partialorder %v72, 0.0
  %vm89 = vcmp.eq.f32.partialorder %v73, 0.0
  %vm90 = vcmp.eq.f32.partialorder %v74, 0.0
  %vm91 = vcmp.eq.f32.partialorder %v75, 0.0
  %vm92 = vcmp.eq.f32.partialorder %v76, 0.0
  %vm93 = vcmp.eq.f32.partialorder %v77, 0.0
  %s94 = sadd.s32 0, 0
  %s95 = smul.u32 %s94, 64
  %s96 = smul.u32 0, 128
  %s97 = sadd.s32 %s95, 64
  %p98 = scmp.gt.s32.totalorder %s97, 64
  %s99 = sadd.s32 %s96, 128
  %p100 = scmp.gt.s32.totalorder %s99, 128
  %p101 = por %p98, %p100
  // Predicated region
  $region14: #{_lambda_.1} parent=0 // pred_check
    %p102 = pneg %p101
  $region15: #{_lambda_.1} parent=0 // pred_check_branch
    %104 = sbr.rel (%p102) target = $region17
  $region16: #{_lambda_.1} parent=0 // pred_region
    %v105 = vlaneseq
    %v106 = vshrl.u32 %v105, 7
    %v107 = vadd.s32 %v106, 8
    %v108 = vadd.s32 %v106, 16
    %v109 = vadd.s32 %v106, 24
    %v110 = vadd.s32 %v106, 32
    %v111 = vadd.s32 %v106, 40
    %v112 = vadd.s32 %v106, 48
    %v113 = vadd.s32 %v106, 56
    %v114 = vlaneseq
    %v115 = vand.u32 %v114, 127
    %s116 = ssub.s32 64, %s95
    %v117 = vstv %s116
    %vm118 = vcmp.lt.s32.totalorder %v106, %v117
    %vm119 = vcmp.lt.s32.totalorder %v107, %v117
    %vm120 = vcmp.lt.s32.totalorder %v108, %v117
    %vm121 = vcmp.lt.s32.totalorder %v109, %v117
    %vm122 = vcmp.lt.s32.totalorder %v110, %v117
    %vm123 = vcmp.lt.s32.totalorder %v111, %v117
    %vm124 = vcmp.lt.s32.totalorder %v112, %v117
    %vm125 = vcmp.lt.s32.totalorder %v113, %v117
    %s126 = ssub.s32 128, %s96
    %v127 = vstv %s126
    %vm128 = vcmp.lt.s32.totalorder %v115, %v127
    %vm129 = vmand %vm118, %vm128
    %vm130 = vmand %vm119, %vm128
    %vm131 = vmand %vm120, %vm128
    %vm132 = vmand %vm121, %vm128
    %vm133 = vmand %vm122, %vm128
    %vm134 = vmand %vm123, %vm128
    %vm135 = vmand %vm124, %vm128
    %vm136 = vmand %vm125, %vm128
    %vm137 = vmand %vm78, %vm129
    %vm138 = vmand %vm79, %vm130
    %vm139 = vmand %vm80, %vm131
    %vm140 = vmand %vm81, %vm132
    %vm141 = vmand %vm82, %vm133
    %vm142 = vmand %vm83, %vm134
    %vm143 = vmand %vm84, %vm135
    %vm144 = vmand %vm85, %vm136
    %vm145 = vmand %vm86, %vm129
    %vm146 = vmand %vm87, %vm130
    %vm147 = vmand %vm88, %vm131
    %vm148 = vmand %vm89, %vm132
    %vm149 = vmand %vm90, %vm133
    %vm150 = vmand %vm91, %vm134
    %vm151 = vmand %vm92, %vm135
    %vm152 = vmand %vm93, %vm136
    %v153 = vsub.f32 %v62, 1.0
    %v154 = vsub.f32 %v63, 1.0
    %v155 = vsub.f32 %v64, 1.0
    %v156 = vsub.f32 %v65, 1.0
    %v157 = vsub.f32 %v66, 1.0
    %v158 = vsub.f32 %v67, 1.0
    %v159 = vsub.f32 %v68, 1.0
    %v160 = vsub.f32 %v69, 1.0
    %v161 = vmul.f32 %v153, %v153
    %v162 = vmul.f32 %v154, %v154
    %v163 = vmul.f32 %v155, %v155
    %v164 = vmul.f32 %v156, %v156
    %v165 = vmul.f32 %v157, %v157
    %v166 = vmul.f32 %v158, %v158
    %v167 = vmul.f32 %v159, %v159
    %v168 = vmul.f32 %v160, %v160
    %v169 = vsel %vm137, %v161, 0.0
    %v170 = vsel %vm138, %v162, 0.0
    %v171 = vsel %vm139, %v163, 0.0
    %v172 = vsel %vm140, %v164, 0.0
    %v173 = vsel %vm141, %v165, 0.0
    %v174 = vsel %vm142, %v166, 0.0
    %v175 = vsel %vm143, %v167, 0.0
    %v176 = vsel %vm144, %v168, 0.0
    %v177 = vmul.f32 %v62, %v62
    %v178 = vmul.f32 %v63, %v63
    %v179 = vmul.f32 %v64, %v64
    %v180 = vmul.f32 %v65, %v65
    %v181 = vmul.f32 %v66, %v66
    %v182 = vmul.f32 %v67, %v67
    %v183 = vmul.f32 %v68, %v68
    %v184 = vmul.f32 %v69, %v69
    %v185 = vsel %vm145, %v177, 0.0
    %v186 = vsel %vm146, %v178, 0.0
    %v187 = vsel %vm147, %v179, 0.0
    %v188 = vsel %vm148, %v180, 0.0
    %v189 = vsel %vm149, %v181, 0.0
    %v190 = vsel %vm150, %v182, 0.0
    %v191 = vsel %vm151, %v183, 0.0
    %v192 = vsel %vm152, %v184, 0.0
    %v193 = vld [vmem:[%s2] sm:$0x1]
    %v194 = vadd.f32 %v169, %v170
    %v195 = vadd.f32 %v194, %v171
    %v196 = vadd.f32 %v195, %v172
    %v197 = vadd.f32 %v196, %v173
    %v198 = vadd.f32 %v197, %v174
    %v199 = vadd.f32 %v198, %v175
    %v200 = vadd.f32 %v199, %v176
    %v201 = vrot.slane %v200, 4
    %v202 = vadd.f32 %v200, %v201
    %v203 = vrot.slane %v202, 2
    %v204 = vadd.f32 %v202, %v203
    %v205 = vrot.slane %v204, 1
    %v206 = vadd.f32 %v204, %v205
    %v207 = vadd.f32 %v193, %v206
    %208 = vst [vmem:[%s2] sm:$0x1] %v207
    %v209 = vld [vmem:[%s2 + $0x1] sm:$0x1]
    %v210 = vsel %vm137, 1, 0
    %v211 = vsel %vm138, 1, 0
    %v212 = vsel %vm139, 1, 0
    %v213 = vsel %vm140, 1, 0
    %v214 = vsel %vm141, 1, 0
    %v215 = vsel %vm142, 1, 0
    %v216 = vsel %vm143, 1, 0
    %v217 = vsel %vm144, 1, 0
    %v218 = vcvt.s32.f32 %v210
    %v219 = vcvt.s32.f32 %v211
    %v220 = vcvt.s32.f32 %v212
    %v221 = vcvt.s32.f32 %v213
    %v222 = vcvt.s32.f32 %v214
    %v223 = vcvt.s32.f32 %v215
    %v224 = vcvt.s32.f32 %v216
    %v225 = vcvt.s32.f32 %v217
    %v226 = vadd.f32 %v218, %v219
    %v227 = vadd.f32 %v226, %v220
    %v228 = vadd.f32 %v227, %v221
    %v229 = vadd.f32 %v228, %v222
    %v230 = vadd.f32 %v229, %v223
    %v231 = vadd.f32 %v230, %v224
    %v232 = vadd.f32 %v231, %v225
    %v233 = vrot.slane %v232, 4
    %v234 = vadd.f32 %v232, %v233
    %v235 = vrot.slane %v234, 2
    %v236 = vadd.f32 %v234, %v235
    %v237 = vrot.slane %v236, 1
    %v238 = vadd.f32 %v236, %v237
    %v239 = vadd.f32 %v209, %v238
    %240 = vst [vmem:[%s2 + $0x1] sm:$0x1] %v239
    %v241 = vld [vmem:[%s2 + $0x2] sm:$0x1]
    %v242 = vadd.f32 %v185, %v186
    %v243 = vadd.f32 %v242, %v187
    %v244 = vadd.f32 %v243, %v188
    %v245 = vadd.f32 %v244, %v189
    %v246 = vadd.f32 %v245, %v190
    %v247 = vadd.f32 %v246, %v191
    %v248 = vadd.f32 %v247, %v192
    %v249 = vrot.slane %v248, 4
    %v250 = vadd.f32 %v248, %v249
    %v251 = vrot.slane %v250, 2
    %v252 = vadd.f32 %v250, %v251
    %v253 = vrot.slane %v252, 1
    %v254 = vadd.f32 %v252, %v253
    %v255 = vadd.f32 %v241, %v254
    %256 = vst [vmem:[%s2 + $0x2] sm:$0x1] %v255
    %v257 = vld [vmem:[%s2 + $0x3] sm:$0x1]
    %v258 = vsel %vm145, 1, 0
    %v259 = vsel %vm146, 1, 0
    %v260 = vsel %vm147, 1, 0
    %v261 = vsel %vm148, 1, 0
    %v262 = vsel %vm149, 1, 0
    %v263 = vsel %vm150, 1, 0
    %v264 = vsel %vm151, 1, 0
    %v265 = vsel %vm152, 1, 0
    %v266 = vcvt.s32.f32 %v258
    %v267 = vcvt.s32.f32 %v259
    %v268 = vcvt.s32.f32 %v260
    %v269 = vcvt.s32.f32 %v261
    %v270 = vcvt.s32.f32 %v262
    %v271 = vcvt.s32.f32 %v263
    %v272 = vcvt.s32.f32 %v264
    %v273 = vcvt.s32.f32 %v265
    %v274 = vadd.f32 %v266, %v267
    %v275 = vadd.f32 %v274, %v268
    %v276 = vadd.f32 %v275, %v269
    %v277 = vadd.f32 %v276, %v270
    %v278 = vadd.f32 %v277, %v271
    %v279 = vadd.f32 %v278, %v272
    %v280 = vadd.f32 %v279, %v273
    %v281 = vrot.slane %v280, 4
    %v282 = vadd.f32 %v280, %v281
    %v283 = vrot.slane %v282, 2
    %v284 = vadd.f32 %v282, %v283
    %v285 = vrot.slane %v284, 1
    %v286 = vadd.f32 %v284, %v285
    %v287 = vadd.f32 %v257, %v286
    %288 = vst [vmem:[%s2 + $0x3] sm:$0x1] %v287
  $region17: #{_lambda_.1} parent=0 // pred_fallthru
    _
  %p289 = pneg %p101
  // Predicated region
  $region18: #{_lambda_.1} parent=0 // pred_check
    _
  $region19: #{_lambda_.1} parent=0 // pred_check_branch
    %291 = sbr.rel (%p101) target = $region21
  $region20: #{_lambda_.1} parent=0 // pred_region
    %v292 = vsub.f32 %v62, 1.0
    %v293 = vsub.f32 %v63, 1.0
    %v294 = vsub.f32 %v64, 1.0
    %v295 = vsub.f32 %v65, 1.0
    %v296 = vsub.f32 %v66, 1.0
    %v297 = vsub.f32 %v67, 1.0
    %v298 = vsub.f32 %v68, 1.0
    %v299 = vsub.f32 %v69, 1.0
    %v300 = vmul.f32 %v292, %v292
    %v301 = vmul.f32 %v293, %v293
    %v302 = vmul.f32 %v294, %v294
    %v303 = vmul.f32 %v295, %v295
    %v304 = vmul.f32 %v296, %v296
    %v305 = vmul.f32 %v297, %v297
    %v306 = vmul.f32 %v298, %v298
    %v307 = vmul.f32 %v299, %v299
    %v308 = vsel %vm78, %v300, 0.0
    %v309 = vsel %vm79, %v301, 0.0
    %v310 = vsel %vm80, %v302, 0.0
    %v311 = vsel %vm81, %v303, 0.0
    %v312 = vsel %vm82, %v304, 0.0
    %v313 = vsel %vm83, %v305, 0.0
    %v314 = vsel %vm84, %v306, 0.0
    %v315 = vsel %vm85, %v307, 0.0
    %v316 = vmul.f32 %v62, %v62
    %v317 = vmul.f32 %v63, %v63
    %v318 = vmul.f32 %v64, %v64
    %v319 = vmul.f32 %v65, %v65
    %v320 = vmul.f32 %v66, %v66
    %v321 = vmul.f32 %v67, %v67
    %v322 = vmul.f32 %v68, %v68
    %v323 = vmul.f32 %v69, %v69
    %v324 = vsel %vm86, %v316, 0.0
    %v325 = vsel %vm87, %v317, 0.0
    %v326 = vsel %vm88, %v318, 0.0
    %v327 = vsel %vm89, %v319, 0.0
    %v328 = vsel %vm90, %v320, 0.0
    %v329 = vsel %vm91, %v321, 0.0
    %v330 = vsel %vm92, %v322, 0.0
    %v331 = vsel %vm93, %v323, 0.0
    %v332 = vld [vmem:[%s2] sm:$0x1]
    %v333 = vadd.f32 %v308, %v309
    %v334 = vadd.f32 %v333, %v310
    %v335 = vadd.f32 %v334, %v311
    %v336 = vadd.f32 %v335, %v312
    %v337 = vadd.f32 %v336, %v313
    %v338 = vadd.f32 %v337, %v314
    %v339 = vadd.f32 %v338, %v315
    %v340 = vrot.slane %v339, 4
    %v341 = vadd.f32 %v339, %v340
    %v342 = vrot.slane %v341, 2
    %v343 = vadd.f32 %v341, %v342
    %v344 = vrot.slane %v343, 1
    %v345 = vadd.f32 %v343, %v344
    %v346 = vadd.f32 %v332, %v345
    %347 = vst [vmem:[%s2] sm:$0x1] %v346
    %v348 = vld [vmem:[%s2 + $0x1] sm:$0x1]
    %v349 = vsel %vm78, 1, 0
    %v350 = vsel %vm79, 1, 0
    %v351 = vsel %vm80, 1, 0
    %v352 = vsel %vm81, 1, 0
    %v353 = vsel %vm82, 1, 0
    %v354 = vsel %vm83, 1, 0
    %v355 = vsel %vm84, 1, 0
    %v356 = vsel %vm85, 1, 0
    %v357 = vcvt.s32.f32 %v349
    %v358 = vcvt.s32.f32 %v350
    %v359 = vcvt.s32.f32 %v351
    %v360 = vcvt.s32.f32 %v352
    %v361 = vcvt.s32.f32 %v353
    %v362 = vcvt.s32.f32 %v354
    %v363 = vcvt.s32.f32 %v355
    %v364 = vcvt.s32.f32 %v356
    %v365 = vadd.f32 %v357, %v358
    %v366 = vadd.f32 %v365, %v359
    %v367 = vadd.f32 %v366, %v360
    %v368 = vadd.f32 %v367, %v361
    %v369 = vadd.f32 %v368, %v362
    %v370 = vadd.f32 %v369, %v363
    %v371 = vadd.f32 %v370, %v364
    %v372 = vrot.slane %v371, 4
    %v373 = vadd.f32 %v371, %v372
    %v374 = vrot.slane %v373, 2
    %v375 = vadd.f32 %v373, %v374
    %v376 = vrot.slane %v375, 1
    %v377 = vadd.f32 %v375, %v376
    %v378 = vadd.f32 %v348, %v377
    %379 = vst [vmem:[%s2 + $0x1] sm:$0x1] %v378
    %v380 = vld [vmem:[%s2 + $0x2] sm:$0x1]
    %v381 = vadd.f32 %v324, %v325
    %v382 = vadd.f32 %v381, %v326
    %v383 = vadd.f32 %v382, %v327
    %v384 = vadd.f32 %v383, %v328
    %v385 = vadd.f32 %v384, %v329
    %v386 = vadd.f32 %v385, %v330
    %v387 = vadd.f32 %v386, %v331
    %v388 = vrot.slane %v387, 4
    %v389 = vadd.f32 %v387, %v388
    %v390 = vrot.slane %v389, 2
    %v391 = vadd.f32 %v389, %v390
    %v392 = vrot.slane %v391, 1
    %v393 = vadd.f32 %v391, %v392
    %v394 = vadd.f32 %v380, %v393
    %395 = vst [vmem:[%s2 + $0x2] sm:$0x1] %v394
    %v396 = vld [vmem:[%s2 + $0x3] sm:$0x1]
    %v397 = vsel %vm86, 1, 0
    %v398 = vsel %vm87, 1, 0
    %v399 = vsel %vm88, 1, 0
    %v400 = vsel %vm89, 1, 0
    %v401 = vsel %vm90, 1, 0
    %v402 = vsel %vm91, 1, 0
    %v403 = vsel %vm92, 1, 0
    %v404 = vsel %vm93, 1, 0
    %v405 = vcvt.s32.f32 %v397
    %v406 = vcvt.s32.f32 %v398
    %v407 = vcvt.s32.f32 %v399
    %v408 = vcvt.s32.f32 %v400
    %v409 = vcvt.s32.f32 %v401
    %v410 = vcvt.s32.f32 %v402
    %v411 = vcvt.s32.f32 %v403
    %v412 = vcvt.s32.f32 %v404
    %v413 = vadd.f32 %v405, %v406
    %v414 = vadd.f32 %v413, %v407
    %v415 = vadd.f32 %v414, %v408
    %v416 = vadd.f32 %v415, %v409
    %v417 = vadd.f32 %v416, %v410
    %v418 = vadd.f32 %v417, %v411
    %v419 = vadd.f32 %v418, %v412
    %v420 = vrot.slane %v419, 4
    %v421 = vadd.f32 %v419, %v420
    %v422 = vrot.slane %v421, 2
    %v423 = vadd.f32 %v421, %v422
    %v424 = vrot.slane %v423, 1
    %v425 = vadd.f32 %v423, %v424
    %v426 = vadd.f32 %v396, %v425
    %427 = vst [vmem:[%s2 + $0x3] sm:$0x1] %v426
  $region21: #{_lambda_.1} parent=0 // pred_fallthru
    _
  // Predicated region
  $region22: #{_lambda_.1} parent=0 // pred_check
    _
  $region23: #{_lambda_.1} parent=0 // pred_check_branch
    %429 = sbr.rel (0) target = $region25
  $region24: #{_lambda_.1} parent=0 // pred_region
    _
  $region25: #{_lambda_.1} parent=0 // pred_fallthru
    _
  // Predicated region
  $region26: #{_lambda_.1} parent=0 // pred_check
    _
  $region27: #{_lambda_.1} parent=0 // pred_check_branch
    %431 = sbr.rel (0) target = $region29
  $region28: #{_lambda_.1} parent=0 // pred_region
    _
  $region29: #{_lambda_.1} parent=0 // pred_fallthru
    _

</llo_original>
